<compile_context>
chip_gen: v5e
topology: v5e:2x2
jax: 0.10.0
libtpu: 0.0.40
codegen_flags: <defaults>
</compile_context>

<pallas_src>
import functools

import jax
import jax.numpy as jnp
import numpy as np
from jax.experimental import pallas as pl
from jax.experimental.pallas import tpu as pltpu  # noqa: F401  (TPU backend assumed)


def _round_up(x, m):
    return (x + m - 1) // m * m


# ----------------------------- Fused kernel ----------------------------------
def clip_matcher_kernel(txt_ref, tok_ref, proj_ref,
                        te_ref, sim_ref, match_ref, *, match_threshold):
    # txt_ref : (T, D, Cp) f32   raw text embeds, transposed in the wrapper so the
    #                            template mean (leading-axis add) directly yields the
    #                            (D, Cp) RHS for the similarity matmul (no .T in-kernel).
    # tok_ref : (Np, W) bf16     visual tokens (zero-padded rows).
    # proj_ref: (W, D)  bf16     visual.proj.
    eps = jnp.float32(1e-12)

    # ---- text: mean over templates + L2 normalize (f32, columns = categories) ----
    txt_m = jnp.mean(txt_ref[...], axis=0)                               # (D, Cp)
    txt_inv = jax.lax.rsqrt(jnp.sum(txt_m * txt_m, axis=0, keepdims=True) + eps)
    txt_n = txt_m * txt_inv                                              # unit columns
    te_ref[...] = txt_n                                                  # (D, Cp) f32

    # ---- image: tokens @ visual.proj (bf16 MXU, f32 acc) + L2 normalize ----------
    img = jnp.dot(tok_ref[...], proj_ref[...],
                  preferred_element_type=jnp.float32)                    # (Np, D) f32
    img_inv = jax.lax.rsqrt(jnp.sum(img * img, axis=-1, keepdims=True) + eps)
    img_n = img * img_inv

    # ---- similarities (lane-dense (Np, Cp) output) + fused threshold -------------
    sims = jnp.dot(img_n.astype(jnp.bfloat16), txt_n.astype(jnp.bfloat16),
                   preferred_element_type=jnp.float32)                   # (Np, Cp)
    sim_ref[...] = sims
    match_ref[...] = (sims > jnp.float32(match_threshold)).astype(jnp.int8)


# --------------------------------- Wrapper ------------------------------------
def clip_matcher_forward(text_raw, tokens, proj, match_threshold=0.5):
    """text_raw: (C, T, D) f32, tokens: (N, W) f32, proj: (W, D) f32.

    Returns (matches bool (N, C), text_embeds f32 (C, D), sims f32 (N, C)).
    matches == torch `matches[0]`.
    """
    C, T, D = text_raw.shape
    N, W = tokens.shape
    assert proj.shape == (W, D)

    Cp = _round_up(C, 128)   # lane-dense sims/matches stores, full MXU columns
    Np = _round_up(N, 32)    # sublane / int8-tile aligned token rows
    # TODO(synk): production should batch real images so Np >= 128/256 real rows
    # (MXU fill) instead of zero padding.

    # Layout plumbing (wrapper-side, one-time):
    #   text: pad C -> Cp, transpose to (T, D, Cp) so minor dims are tile-aligned
    #   tokens/proj: bf16 for the MXU, f32 accumulation inside the kernel
    txt_t = jnp.transpose(
        jnp.pad(text_raw.astype(jnp.float32), ((0, Cp - C), (0, 0), (0, 0))),
        (1, 2, 0))                                               # (T, D, Cp)
    tok_p = jnp.pad(tokens, ((0, Np - N), (0, 0))).astype(jnp.bfloat16)
    proj_b = proj.astype(jnp.bfloat16)

    kernel = functools.partial(clip_matcher_kernel,
                               match_threshold=float(match_threshold))

    te_t, sims_p, match_p = pl.pallas_call(
        kernel,
        out_shape=(
            jax.ShapeDtypeStruct((D, Cp), jnp.float32),    # normalized text embeds^T
            jax.ShapeDtypeStruct((Np, Cp), jnp.float32),   # similarities
            jax.ShapeDtypeStruct((Np, Cp), jnp.int8),      # fused threshold mask
        ),
        grid=(1,),  # tiny shapes: one fused launch; tile over N/C at production sizes
        in_specs=[
            pl.BlockSpec((T, D, Cp), lambda i: (0, 0, 0)),
            pl.BlockSpec((Np, W), lambda i: (0, 0)),
            pl.BlockSpec((W, D), lambda i: (0, 0)),
        ],
        out_specs=(
            pl.BlockSpec((D, Cp), lambda i: (0, 0)),
            pl.BlockSpec((Np, Cp), lambda i: (0, 0)),
            pl.BlockSpec((Np, Cp), lambda i: (0, 0)),
        ),
    )(txt_t, tok_p, proj_b)

    text_embeds = te_t[:, :C].T                     # (C, D), matches torch layout
    sims = sims_p[:N, :C]
    matches = match_p[:N, :C].astype(jnp.bool_)
    return matches, text_embeds, sims


# ------------------------------ Self-test -------------------------------------
if __name__ == "__main__":
    # Small, shape-consistent synthetic setup:
    #   8 categories, 4 templates, CLIP embed dim 128,
    #   16 visual tokens of width 128, visual.proj (128, 128).
    C, T, D = 8, 4, 128
    N_TOK, W = 16, 128
    THRESH = 0.5

    key = jax.random.PRNGKey(0)
    k_txt, k_tok, k_proj = jax.random.split(key, 3)

    text_raw = jax.random.normal(k_txt, (C, T, D), dtype=jnp.float32)
    tokens = jax.random.normal(k_tok, (N_TOK, W), dtype=jnp.float32)
    proj = jax.random.normal(k_proj, (W, D), dtype=jnp.float32) * (W ** -0.5)

    matches, text_embeds, sims = clip_matcher_forward(text_raw, tokens, proj, THRESH)
    jax.block_until_ready(matches)

    # Pure-f32 reference (module semantics).
    ref_te = text_raw.mean(axis=1)
    ref_te = ref_te / jnp.linalg.norm(ref_te, axis=-1, keepdims=True)
    ref_img = tokens @ proj
    ref_img = ref_img / jnp.linalg.norm(ref_img, axis=-1, keepdims=True)
    ref_sims = ref_img @ ref_te.T

    # bf16-matched reference (same cast points as the kernel).
    b_img = jnp.dot(tokens.astype(jnp.bfloat16), proj.astype(jnp.bfloat16),
                    preferred_element_type=jnp.float32)
    b_img = b_img / jnp.linalg.norm(b_img, axis=-1, keepdims=True)
    b_sims = jnp.dot(b_img.astype(jnp.bfloat16), ref_te.astype(jnp.bfloat16).T,
                     preferred_element_type=jnp.float32)

    assert matches.shape == (N_TOK, C) and matches.dtype == jnp.bool_
    # Text path is fully f32 in-kernel -> tight tolerance.
    assert jnp.allclose(text_embeds, ref_te, atol=1e-5, rtol=1e-5)
    # Similarities use bf16 MXU inputs with f32 accumulation.
    assert jnp.allclose(sims, b_sims, atol=2e-3)
    assert jnp.allclose(sims, ref_sims, atol=3e-2)
    # Fused threshold must be consistent with the kernel's own sims, and agree
    # with the reference except (possibly) inside a tiny bf16 band at the threshold.
    assert bool(jnp.all(matches == (sims > THRESH)))
    ref_matches = np.asarray(ref_sims > THRESH)
    near_band = np.abs(np.asarray(ref_sims) - THRESH) < 5e-3
    assert not np.any((np.asarray(matches) != ref_matches) & ~near_band)

    print("KERNEL_OK")
</pallas_src>

<mosaic_0001>
module attributes {stable_mosaic.version = 11 : i64} {
  func.func @clip_matcher_kernel(%arg0: i32, %arg1: memref<4x128x128xf32, #tpu.memory_space<vmem>>, %arg2: memref<32x128xbf16, #tpu.memory_space<vmem>>, %arg3: memref<128x128xbf16, #tpu.memory_space<vmem>>, %arg4: memref<128x128xf32, #tpu.memory_space<vmem>>, %arg5: memref<32x128xf32, #tpu.memory_space<vmem>>, %arg6: memref<32x128xi8, #tpu.memory_space<vmem>>) attributes {dimension_semantics = [#tpu.dimension_semantics<arbitrary>], iteration_bounds = array<i64: 1>, scalar_prefetch = 0 : i64, scratch_operands = 0 : i64, tpu.core_type = #tpu.core_type<tc>, window_params = [{pipeline_mode = #tpu.pipeline_mode<synchronous>, transform_indices = @transform_0, window_bounds = array<i64: 4, 128, 128>}, {pipeline_mode = #tpu.pipeline_mode<synchronous>, transform_indices = @transform_1, window_bounds = array<i64: 32, 128>}, {pipeline_mode = #tpu.pipeline_mode<synchronous>, transform_indices = @transform_2, window_bounds = array<i64: 128, 128>}, {pipeline_mode = #tpu.pipeline_mode<synchronous>, transform_indices = @transform_3, window_bounds = array<i64: 128, 128>}, {pipeline_mode = #tpu.pipeline_mode<synchronous>, transform_indices = @transform_4, window_bounds = array<i64: 32, 128>}, {pipeline_mode = #tpu.pipeline_mode<synchronous>, transform_indices = @transform_5, window_bounds = array<i64: 32, 128>}]} {
    %c0 = arith.constant 0 : index
    %c0_0 = arith.constant 0 : index
    %c0_1 = arith.constant 0 : index
    %0 = vector.load %arg1[%c0, %c0_0, %c0_1] : memref<4x128x128xf32, #tpu.memory_space<vmem>>, vector<4x128x128xf32>
    %cst = arith.constant dense<0.000000e+00> : vector<128x128xf32>
    %1 = vector.multi_reduction <add>, %0, %cst [0] : vector<4x128x128xf32> to vector<128x128xf32>
    %cst_2 = arith.constant 4.000000e+00 : f32
    %2 = vector.broadcast %cst_2 : f32 to vector<128x128xf32>
    %3 = arith.divf %1, %2 : vector<128x128xf32>
    %4 = arith.mulf %3, %3 : vector<128x128xf32>
    %cst_3 = arith.constant dense<0.000000e+00> : vector<128xf32>
    %5 = vector.multi_reduction <add>, %4, %cst_3 [0] : vector<128x128xf32> to vector<128xf32>
    %6 = vector.shape_cast %5 : vector<128xf32> to vector<1x128xf32>
    %cst_4 = arith.constant 9.99999996E-13 : f32
    %7 = vector.broadcast %cst_4 : f32 to vector<1x128xf32>
    %8 = arith.addf %6, %7 : vector<1x128xf32>
    %9 = math.rsqrt %8 : vector<1x128xf32>
    %10 = vector.broadcast %9 : vector<1x128xf32> to vector<128x128xf32>
    %11 = arith.mulf %3, %10 : vector<128x128xf32>
    %c0_5 = arith.constant 0 : index
    %c0_6 = arith.constant 0 : index
    %12 = vector.load %arg4[%c0_5, %c0_6] : memref<128x128xf32, #tpu.memory_space<vmem>>, vector<128x128xf32>
    tpu.vector_store %arg4[%c0_5, %c0_6], %11 {strides = array<i32>} : memref<128x128xf32, #tpu.memory_space<vmem>>, vector<128x128xf32>,
    %c0_7 = arith.constant 0 : index
    %c0_8 = arith.constant 0 : index
    %13 = vector.load %arg2[%c0_7, %c0_8] : memref<32x128xbf16, #tpu.memory_space<vmem>>, vector<32x128xbf16>
    %c0_9 = arith.constant 0 : index
    %c0_10 = arith.constant 0 : index
    %14 = vector.load %arg3[%c0_9, %c0_10] : memref<128x128xbf16, #tpu.memory_space<vmem>>, vector<128x128xbf16>
    %cst_11 = arith.constant dense<0.000000e+00> : vector<32x128xf32>
    %15 = tpu.matmul %13, %14, %cst_11 {dimension_numbers = #tpu.dot_dimension_numbers<[1], [0], [0], [1], [0, 0, 1, 1], [], []>} : vector<32x128xbf16>, vector<128x128xbf16>, vector<32x128xf32> -> vector<32x128xf32>
    %16 = arith.mulf %15, %15 : vector<32x128xf32>
    %cst_12 = arith.constant dense<0.000000e+00> : vector<32xf32>
    %17 = vector.multi_reduction <add>, %16, %cst_12 [1] : vector<32x128xf32> to vector<32xf32>
    %18 = vector.shape_cast %17 : vector<32xf32> to vector<32x1xf32>
    %cst_13 = arith.constant 9.99999996E-13 : f32
    %19 = vector.broadcast %cst_13 : f32 to vector<32x1xf32>
    %20 = arith.addf %18, %19 : vector<32x1xf32>
    %21 = math.rsqrt %20 : vector<32x1xf32>
    %22 = vector.broadcast %21 : vector<32x1xf32> to vector<32x128xf32>
    %23 = arith.mulf %15, %22 : vector<32x128xf32>
    %24 = arith.truncf %23 : vector<32x128xf32> to vector<32x128xbf16>
    %25 = arith.truncf %11 : vector<128x128xf32> to vector<128x128xbf16>
    %cst_14 = arith.constant dense<0.000000e+00> : vector<32x128xf32>
    %26 = tpu.matmul %24, %25, %cst_14 {dimension_numbers = #tpu.dot_dimension_numbers<[1], [0], [0], [1], [0, 0, 1, 1], [], []>} : vector<32x128xbf16>, vector<128x128xbf16>, vector<32x128xf32> -> vector<32x128xf32>
    %c0_15 = arith.constant 0 : index
    %c0_16 = arith.constant 0 : index
    %27 = vector.load %arg5[%c0_15, %c0_16] : memref<32x128xf32, #tpu.memory_space<vmem>>, vector<32x128xf32>
    tpu.vector_store %arg5[%c0_15, %c0_16], %26 {strides = array<i32>} : memref<32x128xf32, #tpu.memory_space<vmem>>, vector<32x128xf32>,
    %cst_17 = arith.constant 5.000000e-01 : f32
    %28 = vector.broadcast %cst_17 : f32 to vector<32x128xf32>
    %29 = arith.cmpf ogt, %26, %28 : vector<32x128xf32>
    %30 = arith.extui %29 : vector<32x128xi1> to vector<32x128xi8>
    %c0_18 = arith.constant 0 : index
    %c0_19 = arith.constant 0 : index
    %31 = vector.load %arg6[%c0_18, %c0_19] : memref<32x128xi8, #tpu.memory_space<vmem>>, vector<32x128xi8>
    tpu.vector_store %arg6[%c0_18, %c0_19], %30 {strides = array<i32>} : memref<32x128xi8, #tpu.memory_space<vmem>>, vector<32x128xi8>,
    return
  }
  func.func @transform_0(%arg0: i32) -> (i32, i32, i32) {
    %c0_i32 = arith.constant 0 : i32
    %c0_i32_0 = arith.constant 0 : i32
    %c0_i32_1 = arith.constant 0 : i32
    %c0_i32_2 = arith.constant 0 : i32
    return %c0_i32, %c0_i32_0, %c0_i32_1 : i32, i32, i32
  }
  func.func @transform_1(%arg0: i32) -> (i32, i32) {
    %c0_i32 = arith.constant 0 : i32
    %c0_i32_0 = arith.constant 0 : i32
    %c0_i32_1 = arith.constant 0 : i32
    return %c0_i32, %c0_i32_0 : i32, i32
  }
  func.func @transform_2(%arg0: i32) -> (i32, i32) {
    %c0_i32 = arith.constant 0 : i32
    %c0_i32_0 = arith.constant 0 : i32
    %c0_i32_1 = arith.constant 0 : i32
    return %c0_i32, %c0_i32_0 : i32, i32
  }
  func.func @transform_3(%arg0: i32) -> (i32, i32) {
    %c0_i32 = arith.constant 0 : i32
    %c0_i32_0 = arith.constant 0 : i32
    %c0_i32_1 = arith.constant 0 : i32
    return %c0_i32, %c0_i32_0 : i32, i32
  }
  func.func @transform_4(%arg0: i32) -> (i32, i32) {
    %c0_i32 = arith.constant 0 : i32
    %c0_i32_0 = arith.constant 0 : i32
    %c0_i32_1 = arith.constant 0 : i32
    return %c0_i32, %c0_i32_0 : i32, i32
  }
  func.func @transform_5(%arg0: i32) -> (i32, i32) {
    %c0_i32 = arith.constant 0 : i32
    %c0_i32_0 = arith.constant 0 : i32
    %c0_i32_1 = arith.constant 0 : i32
    return %c0_i32, %c0_i32_0 : i32, i32
  }
}

</mosaic_0001>

<llo_original>
// kernel: tpu_custom_call.1
$region0: #{tpu_custom_call.1}
  #allocation0 [shape = 'u32[]', space=smem, size = 0x4, offset = 0x4, fixed_abs, tag = 'smem constant byte address 0x4 - core index']
  #allocation1 [shape = 'u32[72,128]{1,0:T(1,128)}', space=vmem, size = 0x9000, scoped, tag = 'internal scratch']
  %s0 = inlined_call_operand.hbm [shape: f32[4,128,128], index: 0, kind: input, shape index: {}]
  %s1 = inlined_call_operand.hbm [shape: bf16[32,128], index: 1, kind: input, shape index: {}]
  %s2 = inlined_call_operand.hbm [shape: bf16[128,128], index: 2, kind: input, shape index: {}]
  %s3 = inlined_call_operand.hbm [shape: f32[128,128], index: 3, kind: output, shape index: {0}]
  %s4 = inlined_call_operand.hbm [shape: f32[32,128], index: 4, kind: output, shape index: {1}]
  %s5 = inlined_call_operand.hbm [shape: s8[32,128], index: 5, kind: output, shape index: {2}]
  %6 = xla_tuple %s3, %s4, %s5
  %s7 = sld [smem:[#allocation0]]
  $region50: #{tpu_custom_call.1} parent=0
    _
  %s9 = ssub.s32 1, %s7
  %s10 = scalar_select 0, %s9, %s7
  $region1: #{tpu_custom_call.1} parent=0
    #allocation2 [shape = 'u8[262144]{0}', space=vmem, size = 0x40000, scoped, tag = 'input window, operand 0, single buffered']
    #allocation3 [shape = 's32[1]{0}', space=sflag, size = 0x4, scoped, tag = 'scoped memory for tpu_custom_call.1']
    #allocation4 [shape = 's32[1]{0}', space=sflag, size = 0x4, scoped, tag = 'scoped memory for tpu_custom_call.1']
    #allocation5 [shape = 'u8[8192]{0}', space=vmem, size = 0x2000, scoped, tag = 'input window, operand 1, single buffered']
    #allocation6 [shape = 's32[1]{0}', space=sflag, size = 0x4, scoped, tag = 'scoped memory for tpu_custom_call.1']
    #allocation7 [shape = 'u8[32768]{0}', space=vmem, size = 0x8000, scoped, tag = 'input window, operand 2, single buffered']
    #allocation8 [shape = 'u8[65536]{0}', space=vmem, size = 0x10000, scoped, tag = 'output window, operand 0, single buffered']
    #allocation9 [shape = 'u8[16384]{0}', space=vmem, size = 0x4000, scoped, tag = 'output window, operand 1, single buffered']
    #allocation10 [shape = 's32[1]{0}', space=sflag, size = 0x4, scoped, tag = 'scoped memory for tpu_custom_call.1']
    #allocation11 [shape = 'u8[4096]{0}', space=vmem, size = 0x1000, scoped, tag = 'output window, operand 2, single buffered']
    %11 = vsyncpa [#allocation3], 0
    %12 = vsyncpa [#allocation6], 0
    %13 = vsyncpa [#allocation4], 0
    %14 = vsyncpa [#allocation10], 0
    // Predicated region
    $region2: #{tpu_custom_call.1} parent=1 // pred_check
      _
    $region3: #{tpu_custom_call.1} parent=1 // pred_check_branch
      %16 = sbr.rel (0) target = $region5
    $region4: #{tpu_custom_call.1} parent=1 // pred_region
      %18 = vsyncadd [#allocation3], 0
      %s19 = sshll.u32 %s0, 4
      %s20 = int_to_ptr.hbm [resolvable:$true] %s19
      %s21 = sshll.u32 [#allocation2], 4
      %s22 = int_to_ptr.vmem [resolvable:$true] %s21
      %27 = dma.hbm_to_vmem [thread:$0]  %s20, 8192, %s22, [#allocation3], 128, 128, 8
    $region5: #{tpu_custom_call.1} parent=1 // pred_fallthru
      _
    // Predicated region
    $region6: #{tpu_custom_call.1} parent=1 // pred_check
      _
    $region7: #{tpu_custom_call.1} parent=1 // pred_check_branch
      %29 = sbr.rel (0) target = $region9
    $region8: #{tpu_custom_call.1} parent=1 // pred_region
      %31 = vsyncadd [#allocation6], 0
      %s32 = sshll.u32 %s1, 4
      %s33 = int_to_ptr.hbm [resolvable:$true] %s32
      %s34 = sshll.u32 [#allocation5], 4
      %s35 = int_to_ptr.vmem [resolvable:$true] %s34
      %40 = dma.hbm_to_vmem [thread:$0]  %s33, 256, %s35, [#allocation6], 64, 64, 4
    $region9: #{tpu_custom_call.1} parent=1 // pred_fallthru
      _
    // Predicated region
    $region10: #{tpu_custom_call.1} parent=1 // pred_check
      _
    $region11: #{tpu_custom_call.1} parent=1 // pred_check_branch
      %42 = sbr.rel (0) target = $region13
    $region12: #{tpu_custom_call.1} parent=1 // pred_region
      %44 = vsyncadd [#allocation6], 0
      %s45 = sshll.u32 %s2, 4
      %s46 = int_to_ptr.hbm [resolvable:$true] %s45
      %s47 = sshll.u32 [#allocation7], 4
      %s48 = int_to_ptr.vmem [resolvable:$true] %s47
      %53 = dma.hbm_to_vmem [thread:$0]  %s46, 1024, %s48, [#allocation6], 64, 64, 4
    $region13: #{tpu_custom_call.1} parent=1 // pred_fallthru
      _
    // Predicated region
    $region14: #{tpu_custom_call.1} parent=1 // pred_check
      _
    $region15: #{tpu_custom_call.1} parent=1 // pred_check_branch
      %55 = sbr.rel (0) target = $region17
    $region16: #{tpu_custom_call.1} parent=1 // pred_region
      %57 = dma.done [#allocation3], 8192
    $region17: #{tpu_custom_call.1} parent=1 // pred_fallthru
      _
    // Predicated region
    $region18: #{tpu_custom_call.1} parent=1 // pred_check
      _
    $region19: #{tpu_custom_call.1} parent=1 // pred_check_branch
      %59 = sbr.rel (0) target = $region21
    $region20: #{tpu_custom_call.1} parent=1 // pred_region
      %61 = dma.done [#allocation6], 256
    $region21: #{tpu_custom_call.1} parent=1 // pred_fallthru
      _
    // Predicated region
    $region22: #{tpu_custom_call.1} parent=1 // pred_check
      _
    $region23: #{tpu_custom_call.1} parent=1 // pred_check_branch
      %63 = sbr.rel (0) target = $region25
    $region24: #{tpu_custom_call.1} parent=1 // pred_region
      %65 = dma.done [#allocation6], 1024
    $region25: #{tpu_custom_call.1} parent=1 // pred_fallthru
      _
    %v68 = vld [vmem:[#allocation2] sm:$0xff]
    %v69 = vld [vmem:[#allocation2 + $0x8] sm:$0xff]
    %v70 = vld [vmem:[#allocation2 + $0x10] sm:$0xff]
    %v71 = vld [vmem:[#allocation2 + $0x18] sm:$0xff]
    %v72 = vld [vmem:[#allocation2 + $0x20] sm:$0xff]
    %v73 = vld [vmem:[#allocation2 + $0x28] sm:$0xff]
    %v74 = vld [vmem:[#allocation2 + $0x30] sm:$0xff]
    %v75 = vld [vmem:[#allocation2 + $0x38] sm:$0xff]
    %v76 = vld [vmem:[#allocation2 + $0x40] sm:$0xff]
    %v77 = vld [vmem:[#allocation2 + $0x48] sm:$0xff]
    %v78 = vld [vmem:[#allocation2 + $0x50] sm:$0xff]
    %v79 = vld [vmem:[#allocation2 + $0x58] sm:$0xff]
    %v80 = vld [vmem:[#allocation2 + $0x60] sm:$0xff]
    %v81 = vld [vmem:[#allocation2 + $0x68] sm:$0xff]
    %v82 = vld [vmem:[#allocation2 + $0x70] sm:$0xff]
    %v83 = vld [vmem:[#allocation2 + $0x78] sm:$0xff]
    %v84 = vld [vmem:[#allocation2 + $0x80] sm:$0xff]
    %v85 = vld [vmem:[#allocation2 + $0x88] sm:$0xff]
    %v86 = vld [vmem:[#allocation2 + $0x90] sm:$0xff]
    %v87 = vld [vmem:[#allocation2 + $0x98] sm:$0xff]
    %v88 = vld [vmem:[#allocation2 + $0xa0] sm:$0xff]
    %v89 = vld [vmem:[#allocation2 + $0xa8] sm:$0xff]
    %v90 = vld [vmem:[#allocation2 + $0xb0] sm:$0xff]
    %v91 = vld [vmem:[#allocation2 + $0xb8] sm:$0xff]
    %v92 = vld [vmem:[#allocation2 + $0xc0] sm:$0xff]
    %v93 = vld [vmem:[#allocation2 + $0xc8] sm:$0xff]
    %v94 = vld [vmem:[#allocation2 + $0xd0] sm:$0xff]
    %v95 = vld [vmem:[#allocation2 + $0xd8] sm:$0xff]
    %v96 = vld [vmem:[#allocation2 + $0xe0] sm:$0xff]
    %v97 = vld [vmem:[#allocation2 + $0xe8] sm:$0xff]
    %v98 = vld [vmem:[#allocation2 + $0xf0] sm:$0xff]
    %v99 = vld [vmem:[#allocation2 + $0xf8] sm:$0xff]
    %v100 = vld [vmem:[#allocation2 + $0x100] sm:$0xff]
    %v101 = vld [vmem:[#allocation2 + $0x108] sm:$0xff]
    %v102 = vld [vmem:[#allocation2 + $0x110] sm:$0xff]
    %v103 = vld [vmem:[#allocation2 + $0x118] sm:$0xff]
    %v104 = vld [vmem:[#allocation2 + $0x120] sm:$0xff]
    %v105 = vld [vmem:[#allocation2 + $0x128] sm:$0xff]
    %v106 = vld [vmem:[#allocation2 + $0x130] sm:$0xff]
    %v107 = vld [vmem:[#allocation2 + $0x138] sm:$0xff]
    %v108 = vld [vmem:[#allocation2 + $0x140] sm:$0xff]
    %v109 = vld [vmem:[#allocation2 + $0x148] sm:$0xff]
    %v110 = vld [vmem:[#allocation2 + $0x150] sm:$0xff]
    %v111 = vld [vmem:[#allocation2 + $0x158] sm:$0xff]
    %v112 = vld [vmem:[#allocation2 + $0x160] sm:$0xff]
    %v113 = vld [vmem:[#allocation2 + $0x168] sm:$0xff]
    %v114 = vld [vmem:[#allocation2 + $0x170] sm:$0xff]
    %v115 = vld [vmem:[#allocation2 + $0x178] sm:$0xff]
    %v116 = vld [vmem:[#allocation2 + $0x180] sm:$0xff]
    %v117 = vld [vmem:[#allocation2 + $0x188] sm:$0xff]
    %v118 = vld [vmem:[#allocation2 + $0x190] sm:$0xff]
    %v119 = vld [vmem:[#allocation2 + $0x198] sm:$0xff]
    %v120 = vld [vmem:[#allocation2 + $0x1a0] sm:$0xff]
    %v121 = vld [vmem:[#allocation2 + $0x1a8] sm:$0xff]
    %v122 = vld [vmem:[#allocation2 + $0x1b0] sm:$0xff]
    %v123 = vld [vmem:[#allocation2 + $0x1b8] sm:$0xff]
    %v124 = vld [vmem:[#allocation2 + $0x1c0] sm:$0xff]
    %v125 = vld [vmem:[#allocation2 + $0x1c8] sm:$0xff]
    %v126 = vld [vmem:[#allocation2 + $0x1d0] sm:$0xff]
    %v127 = vld [vmem:[#allocation2 + $0x1d8] sm:$0xff]
    %v128 = vld [vmem:[#allocation2 + $0x1e0] sm:$0xff]
    %v129 = vld [vmem:[#allocation2 + $0x1e8] sm:$0xff]
    %v130 = vld [vmem:[#allocation2 + $0x1f0] sm:$0xff]
    %v131 = vld [vmem:[#allocation2 + $0x1f8] sm:$0xff]
    %v132 = vadd.f32 %v68, %v84
    %v133 = vadd.f32 %v132, %v100
    %v134 = vadd.f32 %v133, %v116
    %v135 = vadd.f32 %v69, %v85
    %v136 = vadd.f32 %v135, %v101
    %v137 = vadd.f32 %v136, %v117
    %v138 = vadd.f32 %v70, %v86
    %v139 = vadd.f32 %v138, %v102
    %v140 = vadd.f32 %v139, %v118
    %v141 = vadd.f32 %v71, %v87
    %v142 = vadd.f32 %v141, %v103
    %v143 = vadd.f32 %v142, %v119
    %v144 = vadd.f32 %v72, %v88
    %v145 = vadd.f32 %v144, %v104
    %v146 = vadd.f32 %v145, %v120
    %v147 = vadd.f32 %v73, %v89
    %v148 = vadd.f32 %v147, %v105
    %v149 = vadd.f32 %v148, %v121
    %v150 = vadd.f32 %v74, %v90
    %v151 = vadd.f32 %v150, %v106
    %v152 = vadd.f32 %v151, %v122
    %v153 = vadd.f32 %v75, %v91
    %v154 = vadd.f32 %v153, %v107
    %v155 = vadd.f32 %v154, %v123
    %v156 = vadd.f32 %v76, %v92
    %v157 = vadd.f32 %v156, %v108
    %v158 = vadd.f32 %v157, %v124
    %v159 = vadd.f32 %v77, %v93
    %v160 = vadd.f32 %v159, %v109
    %v161 = vadd.f32 %v160, %v125
    %v162 = vadd.f32 %v78, %v94
    %v163 = vadd.f32 %v162, %v110
    %v164 = vadd.f32 %v163, %v126
    %v165 = vadd.f32 %v79, %v95
    %v166 = vadd.f32 %v165, %v111
    %v167 = vadd.f32 %v166, %v127
    %v168 = vadd.f32 %v80, %v96
    %v169 = vadd.f32 %v168, %v112
    %v170 = vadd.f32 %v169, %v128
    %v171 = vadd.f32 %v81, %v97
    %v172 = vadd.f32 %v171, %v113
    %v173 = vadd.f32 %v172, %v129
    %v174 = vadd.f32 %v82, %v98
    %v175 = vadd.f32 %v174, %v114
    %v176 = vadd.f32 %v175, %v130
    %v177 = vadd.f32 %v83, %v99
    %v178 = vadd.f32 %v177, %v115
    %v179 = vadd.f32 %v178, %v131
    %v180 = vrcp.pop 4.0
    %v181 = vmul.f32 4.0, %v180
    %v182 = vsub.f32 1.0, %v181
    %v183 = vmul.f32 %v180, %v182
    %v184 = vadd.f32 %v180, %v183
    %vm185 = vweird.f32 %v180
    %v186 = vsel %vm185, %v180, %v184
    %v187 = vmul.f32 %v134, %v186
    %v188 = vmul.f32 %v137, %v186
    %v189 = vmul.f32 %v140, %v186
    %v190 = vmul.f32 %v143, %v186
    %v191 = vmul.f32 %v146, %v186
    %v192 = vmul.f32 %v149, %v186
    %v193 = vmul.f32 %v152, %v186
    %v194 = vmul.f32 %v155, %v186
    %v195 = vmul.f32 %v158, %v186
    %v196 = vmul.f32 %v161, %v186
    %v197 = vmul.f32 %v164, %v186
    %v198 = vmul.f32 %v167, %v186
    %v199 = vmul.f32 %v170, %v186
    %v200 = vmul.f32 %v173, %v186
    %v201 = vmul.f32 %v176, %v186
    %v202 = vmul.f32 %v179, %v186
    %v203 = vmul.f32 %v187, %v187
    %v204 = vmul.f32 %v188, %v188
    %v205 = vmul.f32 %v189, %v189
    %v206 = vmul.f32 %v190, %v190
    %v207 = vmul.f32 %v191, %v191
    %v208 = vmul.f32 %v192, %v192
    %v209 = vmul.f32 %v193, %v193
    %v210 = vmul.f32 %v194, %v194
    %v211 = vmul.f32 %v195, %v195
    %v212 = vmul.f32 %v196, %v196
    %v213 = vmul.f32 %v197, %v197
    %v214 = vmul.f32 %v198, %v198
    %v215 = vmul.f32 %v199, %v199
    %v216 = vmul.f32 %v200, %v200
    %v217 = vmul.f32 %v201, %v201
    %v218 = vmul.f32 %v202, %v202
    %v219 = vadd.f32 %v203, %v204
    %v220 = vadd.f32 %v219, %v205
    %v221 = vadd.f32 %v220, %v206
    %v222 = vadd.f32 %v221, %v207
    %v223 = vadd.f32 %v222, %v208
    %v224 = vadd.f32 %v223, %v209
    %v225 = vadd.f32 %v224, %v210
    %v226 = vadd.f32 %v225, %v211
    %v227 = vadd.f32 %v226, %v212
    %v228 = vadd.f32 %v227, %v213
    %v229 = vadd.f32 %v228, %v214
    %v230 = vadd.f32 %v229, %v215
    %v231 = vadd.f32 %v230, %v216
    %v232 = vadd.f32 %v231, %v217
    %v233 = vadd.f32 %v232, %v218
    %v234 = vrot.slane %v233, 4
    %v235 = vadd.f32 %v233, %v234
    %v236 = vrot.slane %v235, 2
    %v237 = vadd.f32 %v235, %v236
    %v238 = vrot.slane %v237, 1
    %v239 = vadd.f32 %v237, %v238
    %v240 = vadd.f32 %v239, 1e-12
    %v241 = vrsqrt.pop %v240
    %v242 = vmul.f32 %v241, %v240
    %v243 = vmul.f32 %v242, %v241
    %v244 = vmul.f32 0.5, %v243
    %v245 = vsub.f32 1.5, %v244
    %v246 = vmul.f32 %v241, %v245
    %vm247 = vweird.f32 %v240
    %vm248 = vweird.f32 %v241
    %vm249 = vmor %vm247, %vm248
    %v250 = vsel %vm249, %v241, %v246
    %v251 = vmul.f32 %v187, %v250
    %v252 = vmul.f32 %v188, %v250
    %v253 = vmul.f32 %v189, %v250
    %v254 = vmul.f32 %v190, %v250
    %v255 = vmul.f32 %v191, %v250
    %v256 = vmul.f32 %v192, %v250
    %v257 = vmul.f32 %v193, %v250
    %v258 = vmul.f32 %v194, %v250
    %v259 = vmul.f32 %v195, %v250
    %v260 = vmul.f32 %v196, %v250
    %v261 = vmul.f32 %v197, %v250
    %v262 = vmul.f32 %v198, %v250
    %v263 = vmul.f32 %v199, %v250
    %v264 = vmul.f32 %v200, %v250
    %v265 = vmul.f32 %v201, %v250
    %v266 = vmul.f32 %v202, %v250
    %267 = vst [vmem:[#allocation8] sm:$0xff] %v251
    %268 = vst [vmem:[#allocation8 + $0x8] sm:$0xff] %v252
    %269 = vst [vmem:[#allocation8 + $0x10] sm:$0xff] %v253
    %270 = vst [vmem:[#allocation8 + $0x18] sm:$0xff] %v254
    %271 = vst [vmem:[#allocation8 + $0x20] sm:$0xff] %v255
    %272 = vst [vmem:[#allocation8 + $0x28] sm:$0xff] %v256
    %273 = vst [vmem:[#allocation8 + $0x30] sm:$0xff] %v257
    %274 = vst [vmem:[#allocation8 + $0x38] sm:$0xff] %v258
    %275 = vst [vmem:[#allocation8 + $0x40] sm:$0xff] %v259
    %276 = vst [vmem:[#allocation8 + $0x48] sm:$0xff] %v260
    %277 = vst [vmem:[#allocation8 + $0x50] sm:$0xff] %v261
    %278 = vst [vmem:[#allocation8 + $0x58] sm:$0xff] %v262
    %279 = vst [vmem:[#allocation8 + $0x60] sm:$0xff] %v263
    %280 = vst [vmem:[#allocation8 + $0x68] sm:$0xff] %v264
    %281 = vst [vmem:[#allocation8 + $0x70] sm:$0xff] %v265
    %282 = vst [vmem:[#allocation8 + $0x78] sm:$0xff] %v266
    %v283 = vld [vmem:[#allocation5] sm:$0xf]
    %v284 = vld [vmem:[#allocation5 + $0x4] sm:$0xf]
    %v285 = vld [vmem:[#allocation5 + $0x8] sm:$0xf]
    %v286 = vld [vmem:[#allocation5 + $0xc] sm:$0xf]
    %v287 = vld [vmem:[#allocation7] sm:$0xf]
    %v288 = vld [vmem:[#allocation7 + $0x4] sm:$0xf]
    %v289 = vld [vmem:[#allocation7 + $0x8] sm:$0xf]
    %v290 = vld [vmem:[#allocation7 + $0xc] sm:$0xf]
    %v291 = vld [vmem:[#allocation7 + $0x10] sm:$0xf]
    %v292 = vld [vmem:[#allocation7 + $0x14] sm:$0xf]
    %v293 = vld [vmem:[#allocation7 + $0x18] sm:$0xf]
    %v294 = vld [vmem:[#allocation7 + $0x1c] sm:$0xf]
    %v295 = vld [vmem:[#allocation7 + $0x20] sm:$0xf]
    %v296 = vld [vmem:[#allocation7 + $0x24] sm:$0xf]
    %v297 = vld [vmem:[#allocation7 + $0x28] sm:$0xf]
    %v298 = vld [vmem:[#allocation7 + $0x2c] sm:$0xf]
    %v299 = vld [vmem:[#allocation7 + $0x30] sm:$0xf]
    %v300 = vld [vmem:[#allocation7 + $0x34] sm:$0xf]
    %v301 = vld [vmem:[#allocation7 + $0x38] sm:$0xf]
    %v302 = vld [vmem:[#allocation7 + $0x3c] sm:$0xf]
    %v307 = vunpack.c.l.b16 %v283
    %v308 = vunpack.c.l.b16 %v284
    %v309 = vunpack.c.l.b16 %v285
    %v310 = vunpack.c.l.b16 %v286
    %v311 = vpack.c.b16 %v308, %v307
    %v312 = vpack.c.b16 %v310, %v309
    %v331 = vunpack.c.l.b16 %v287
    %v332 = vunpack.c.l.b16 %v288
    %v333 = vunpack.c.l.b16 %v289
    %v334 = vunpack.c.l.b16 %v290
    %v335 = vunpack.c.l.b16 %v291
    %v336 = vunpack.c.l.b16 %v292
    %v337 = vunpack.c.l.b16 %v293
    %v338 = vunpack.c.l.b16 %v294
    %v339 = vunpack.c.l.b16 %v295
    %v340 = vunpack.c.l.b16 %v296
    %v341 = vunpack.c.l.b16 %v297
    %v342 = vunpack.c.l.b16 %v298
    %v343 = vunpack.c.l.b16 %v299
    %v344 = vunpack.c.l.b16 %v300
    %v345 = vunpack.c.l.b16 %v301
    %v346 = vunpack.c.l.b16 %v302
    %v347 = vpack.c.b16 %v332, %v331
    %v348 = vpack.c.b16 %v334, %v333
    %v349 = vpack.c.b16 %v336, %v335
    %v350 = vpack.c.b16 %v338, %v337
    %v351 = vpack.c.b16 %v340, %v339
    %v352 = vpack.c.b16 %v342, %v341
    %v353 = vpack.c.b16 %v344, %v343
    %v354 = vpack.c.b16 %v346, %v345
    %363 = vmatpush.bf16.msra.mxu0 %v354
    %364 = vmatpush.bf16.msra.mxu0 %v353
    %365 = vmatpush.bf16.msra.mxu0 %v352
    %366 = vmatpush.bf16.msra.mxu0 %v351
    %367 = vmatpush.bf16.msra.mxu0 %v350
    %368 = vmatpush.bf16.msra.mxu0 %v349
    %369 = vmatpush.bf16.msra.mxu0 %v348
    %370 = vmatpush.bf16.msra.mxu0 %v347
    %371 = vmatmul.bf16.gmra.mxu0 %v311
    %v372 = vpop.f32.mrf.mxu0
    %v373 = vadd.f32 0.0, %v372
    %v374 = vpop.f32.mrf.mxu0
    %v375 = vadd.f32 0.0, %v374
    %376 = vmatmul.bf16.gmra.mxu0 %v312
    %v377 = vpop.f32.mrf.mxu0
    %v378 = vadd.f32 0.0, %v377
    %v379 = vpop.f32.mrf.mxu0
    %v380 = vadd.f32 0.0, %v379
    %381 = vdwg.mxu0
    %v382 = vmul.f32 %v373, %v373
    %v383 = vmul.f32 %v375, %v375
    %v384 = vmul.f32 %v378, %v378
    %v385 = vmul.f32 %v380, %v380
    %386 = vadd.xlane.f32.xlu0 %v382
    %v387 = vpop.xlane.xlu0 %386
    %388 = vadd.xlane.f32.xlu0 %v383
    %v389 = vpop.xlane.xlu0 %388
    %390 = vadd.xlane.f32.xlu0 %v384
    %v391 = vpop.xlane.xlu0 %390
    %392 = vadd.xlane.f32.xlu0 %v385
    %v393 = vpop.xlane.xlu0 %392
    %v394 = vadd.f32 %v387, 1e-12
    %v395 = vadd.f32 %v389, 1e-12
    %v396 = vadd.f32 %v391, 1e-12
    %v397 = vadd.f32 %v393, 1e-12
    %v398 = vrsqrt.pop %v394
    %v399 = vmul.f32 %v398, %v394
    %v400 = vmul.f32 %v399, %v398
    %v401 = vmul.f32 0.5, %v400
    %v402 = vsub.f32 1.5, %v401
    %v403 = vmul.f32 %v398, %v402
    %vm404 = vweird.f32 %v394
    %vm405 = vweird.f32 %v398
    %vm406 = vmor %vm404, %vm405
    %v407 = vsel %vm406, %v398, %v403
    %v408 = vrsqrt.pop %v395
    %v409 = vmul.f32 %v408, %v395
    %v410 = vmul.f32 %v409, %v408
    %v411 = vmul.f32 0.5, %v410
    %v412 = vsub.f32 1.5, %v411
    %v413 = vmul.f32 %v408, %v412
    %vm414 = vweird.f32 %v395
    %vm415 = vweird.f32 %v408
    %vm416 = vmor %vm414, %vm415
    %v417 = vsel %vm416, %v408, %v413
    %v418 = vrsqrt.pop %v396
    %v419 = vmul.f32 %v418, %v396
    %v420 = vmul.f32 %v419, %v418
    %v421 = vmul.f32 0.5, %v420
    %v422 = vsub.f32 1.5, %v421
    %v423 = vmul.f32 %v418, %v422
    %vm424 = vweird.f32 %v396
    %vm425 = vweird.f32 %v418
    %vm426 = vmor %vm424, %vm425
    %v427 = vsel %vm426, %v418, %v423
    %v428 = vrsqrt.pop %v397
    %v429 = vmul.f32 %v428, %v397
    %v430 = vmul.f32 %v429, %v428
    %v431 = vmul.f32 0.5, %v430
    %v432 = vsub.f32 1.5, %v431
    %v433 = vmul.f32 %v428, %v432
    %vm434 = vweird.f32 %v397
    %vm435 = vweird.f32 %v428
    %vm436 = vmor %vm434, %vm435
    %v437 = vsel %vm436, %v428, %v433
    %v438 = vmul.f32 %v373, %v407
    %v439 = vmul.f32 %v375, %v417
    %v440 = vmul.f32 %v378, %v427
    %v441 = vmul.f32 %v380, %v437
    %v442 = vpack.c.bf16 %v439, %v438
    %v443 = vpack.c.bf16 %v441, %v440
    %v444 = vpack.c.bf16 %v252, %v251
    %v445 = vpack.c.bf16 %v254, %v253
    %v446 = vpack.c.bf16 %v256, %v255
    %v447 = vpack.c.bf16 %v258, %v257
    %v448 = vpack.c.bf16 %v260, %v259
    %v449 = vpack.c.bf16 %v262, %v261
    %v450 = vpack.c.bf16 %v264, %v263
    %v451 = vpack.c.bf16 %v266, %v265
    %452 = vmatpush.bf16.msra.mxu0 %v451
    %453 = vmatpush.bf16.msra.mxu0 %v450
    %454 = vmatpush.bf16.msra.mxu0 %v449
    %455 = vmatpush.bf16.msra.mxu0 %v448
    %456 = vmatpush.bf16.msra.mxu0 %v447
    %457 = vmatpush.bf16.msra.mxu0 %v446
    %458 = vmatpush.bf16.msra.mxu0 %v445
    %459 = vmatpush.bf16.msra.mxu0 %v444
    %460 = vmatmul.bf16.gmra.mxu0 %v442
    %v461 = vpop.f32.mrf.mxu0
    %v462 = vadd.f32 0.0, %v461
    %v463 = vpop.f32.mrf.mxu0
    %v464 = vadd.f32 0.0, %v463
    %465 = vmatmul.bf16.gmra.mxu0 %v443
    %v466 = vpop.f32.mrf.mxu0
    %v467 = vadd.f32 0.0, %v466
    %v468 = vpop.f32.mrf.mxu0
    %v469 = vadd.f32 0.0, %v468
    %470 = vdwg.mxu0
    %471 = vst [vmem:[#allocation9] sm:$0xff] %v462
    %472 = vst [vmem:[#allocation9 + $0x8] sm:$0xff] %v464
    %473 = vst [vmem:[#allocation9 + $0x10] sm:$0xff] %v467
    %474 = vst [vmem:[#allocation9 + $0x18] sm:$0xff] %v469
    %vm475 = vcmp.gt.f32.partialorder %v462, 0.5
    %vm476 = vcmp.gt.f32.partialorder %v464, 0.5
    %vm477 = vcmp.gt.f32.partialorder %v467, 0.5
    %vm478 = vcmp.gt.f32.partialorder %v469, 0.5
    %vm479 = vmpackc.low %vm476, %vm475
    %vm480 = vmpackc.low %vm478, %vm477
    %v481 = vsel %vm479, 16711935, 0
    %v482 = vsel %vm480, 16711935, 0
    %v483 = vpack.c.b8 %v482, %v481
    %vm484 = vnez %v483
    %v485 = vsel %vm484, 16843009, 0
    %486 = vst [vmem:[#allocation11] sm:$0xff] %v485
    // Predicated region
    $region26: #{tpu_custom_call.1} parent=1 // pred_check
      _
    $region27: #{tpu_custom_call.1} parent=1 // pred_check_branch
      %488 = sbr.rel (0) target = $region29
    $region28: #{tpu_custom_call.1} parent=1 // pred_region
      %490 = vsyncadd [#allocation4], 0
      %s491 = sshll.u32 [#allocation8], 4
      %s492 = int_to_ptr.vmem [resolvable:$true] %s491
      %s493 = sshll.u32 %s3, 4
      %s494 = int_to_ptr.hbm [resolvable:$true] %s493
      %499 = dma.vmem_to_hbm [thread:$0]  %s492, 2048, %s494, [#allocation4], 128, 128, 8
    $region29: #{tpu_custom_call.1} parent=1 // pred_fallthru
      _
    // Predicated region
    $region30: #{tpu_custom_call.1} parent=1 // pred_check
      _
    $region31: #{tpu_custom_call.1} parent=1 // pred_check_branch
      %501 = sbr.rel (0) target = $region33
    $region32: #{tpu_custom_call.1} parent=1 // pred_region
      %503 = vsyncadd [#allocation10], 0
      %s504 = sshll.u32 [#allocation9], 4
      %s505 = int_to_ptr.vmem [resolvable:$true] %s504
      %s506 = sshll.u32 %s4, 4
      %s507 = int_to_ptr.hbm [resolvable:$true] %s506
      %512 = dma.vmem_to_hbm [thread:$0]  %s505, 512, %s507, [#allocation10], 128, 128, 8
    $region33: #{tpu_custom_call.1} parent=1 // pred_fallthru
      _
    // Predicated region
    $region34: #{tpu_custom_call.1} parent=1 // pred_check
      _
    $region35: #{tpu_custom_call.1} parent=1 // pred_check_branch
      %514 = sbr.rel (0) target = $region37
    $region36: #{tpu_custom_call.1} parent=1 // pred_region
      %516 = vsyncadd [#allocation10], 0
      %s518 = sshll.u32 [#allocation11], 4
      %s519 = int_to_ptr.vmem [resolvable:$true] %s518
      %s520 = sshll.u32 %s5, 4
      %s521 = int_to_ptr.hbm [resolvable:$true] %s520
      %523 = dma.vmem_to_hbm [thread:$0]  %s519, 128, %s521, [#allocation10]
    $region37: #{tpu_custom_call.1} parent=1 // pred_fallthru
      _
    // Predicated region
    $region38: #{tpu_custom_call.1} parent=1 // pred_check
      _
    $region39: #{tpu_custom_call.1} parent=1 // pred_check_branch
      %525 = sbr.rel (0) target = $region41
    $region40: #{tpu_custom_call.1} parent=1 // pred_region
      %527 = dma.done [#allocation4], 2048
    $region41: #{tpu_custom_call.1} parent=1 // pred_fallthru
      _
    // Predicated region
    $region42: #{tpu_custom_call.1} parent=1 // pred_check
      _
    $region43: #{tpu_custom_call.1} parent=1 // pred_check_branch
      %529 = sbr.rel (0) target = $region45
    $region44: #{tpu_custom_call.1} parent=1 // pred_region
      %531 = dma.done [#allocation10], 512
    $region45: #{tpu_custom_call.1} parent=1 // pred_fallthru
      _
    // Predicated region
    $region46: #{tpu_custom_call.1} parent=1 // pred_check
      _
    $region47: #{tpu_custom_call.1} parent=1 // pred_check_branch
      %533 = sbr.rel (0) target = $region49
    $region48: #{tpu_custom_call.1} parent=1 // pred_region
      %535 = dma.done [#allocation10], 128
    $region49: #{tpu_custom_call.1} parent=1 // pred_fallthru
      _
    %536 = vsyncpa [#allocation3], 1
    %537 = vsyncpa [#allocation6], 1
    %538 = vsyncpa [#allocation4], 1
    %539 = vsyncpa [#allocation10], 1

</llo_original>
